<compile_context>
chip_gen: v7x
topology: tpu7x:2x2x1
jax: 0.10.0
libtpu: 0.0.40
codegen_flags: <defaults>
</compile_context>

<pallas_src>
import math

import jax
import jax.numpy as jnp
from jax.experimental import pallas as pl
from jax.experimental.pallas import tpu as pltpu


def _copy_kernel(x_ref, o_ref):
    # Dense full-tile copy: no in-kernel reshape/relayout, no masked stores.
    o_ref[...] = x_ref[...]


def _vmem_budget():
    """Per-chip VMEM limit and per-block byte budget."""
    try:
        vmem_bytes = int(pltpu.get_tpu_info().vmem_capacity_bytes)
    except Exception:
        vmem_bytes = 64 << 20  # conservative default (v7x per-TC size)
    # Raise the scoped limit explicitly (v5e default is only 16 MiB) but never
    # past half of physical VMEM.
    vmem_limit = int(min(64 << 20, vmem_bytes // 2))
    # in + out, each double-buffered => ~4x block bytes live; keep 2x headroom.
    block_budget = int(min(4 << 20, vmem_limit // 8))
    return vmem_limit, block_budget


def _slab_dims(total, sub):
    """Pick (rows, lanes) with rows*lanes == total, rows % sub == 0,
    lanes % 128 == 0. Returns None when no dense factorization exists."""
    unit = sub * 128
    if total == 0 or total % unit != 0:
        return None
    m = total // unit
    b = 1
    for cand in range(1, min(m, 32) + 1):  # lanes up to 32*128 = 4096
        if m % cand == 0:
            b = cand
    lanes = 128 * b
    rows = total // lanes  # = sub * (m // b), a multiple of sub
    return rows, lanes


def flat_forward(x):
    """x: (N, ...) -> (N, prod(rest)); matches PyTorch x.view(x.size(0), -1)."""
    n = x.shape[0]
    feat = int(math.prod(x.shape[1:])) if x.ndim > 1 else 1
    x2d = x.reshape(n, feat)              # the logical .view (free, row-major)
    total = n * feat

    itemsize = jnp.dtype(x.dtype).itemsize
    sub = max(8, 32 // itemsize)          # sublane multiple: f32->8, bf16->16, i8->32
    vmem_limit, block_budget = _vmem_budget()

    slab = _slab_dims(total, sub)
    if slab is None:
        # TODO(synk): pad to a (sub,128)-aligned slab for large unaligned
        # inputs; this full-extent single-block copy only holds while the
        # whole tensor fits in VMEM.
        return pl.pallas_call(
            _copy_kernel,
            out_shape=jax.ShapeDtypeStruct((n, feat), x.dtype),
            input_output_aliases={0: 0},
            compiler_params=pltpu.CompilerParams(vmem_limit_bytes=vmem_limit),
        )(x2d)

    rows, lanes = slab
    x_slab = x2d.reshape(rows, lanes)     # wrapper-side dense packing (free)

    # Largest row tile (multiple of `sub`, dividing rows) within the budget.
    row_bytes = lanes * itemsize
    a = rows // sub
    max_d = max(1, block_budget // (sub * row_bytes))
    d = 1
    for cand in range(1, min(a, max_d) + 1):
        if a % cand == 0:
            d = cand
    br = sub * d
    grid = (rows // br,)

    out_slab = pl.pallas_call(
        _copy_kernel,
        out_shape=jax.ShapeDtypeStruct((rows, lanes), x.dtype),
        grid=grid,
        in_specs=[pl.BlockSpec((br, lanes), lambda i: (i, 0))],
        out_specs=pl.BlockSpec((br, lanes), lambda i: (i, 0)),
        input_output_aliases={0: 0},
        compiler_params=pltpu.CompilerParams(
            # Row tiles are independent -> shardable across v7x's 2 TCs when
            # the grid has more than one point.
            dimension_semantics=("parallel",),
            vmem_limit_bytes=vmem_limit,
        ),
    )(x_slab)
    return out_slab.reshape(n, feat)      # back to (N, feat) (free, row-major)


if __name__ == "__main__":
    # Shapes consistent with the module usage: batch=2, channels=4, spatial=16x16.
    N, C, H, W = 2, 4, 16, 16
    key = jax.random.PRNGKey(0)
    x = jax.random.normal(key, (N, C, H, W), dtype=jnp.float32)

    out = jax.block_until_ready(flat_forward(x))
    ref = x.reshape(N, -1)  # == torch: x.view(x.size(0), -1)

    assert out.shape == (N, C * H * W), out.shape
    assert bool(jnp.array_equal(out, ref))
    print("KERNEL_OK")
</pallas_src>

<mosaic_0001>
module attributes {stable_mosaic.version = 11 : i64} {
  func.func @_copy_kernel(%arg0: i32, %arg1: memref<8x256xf32, #tpu.memory_space<vmem>>, %arg2: memref<8x256xf32, #tpu.memory_space<vmem>>) attributes {dimension_semantics = [#tpu.dimension_semantics<parallel>], iteration_bounds = array<i64: 1>, scalar_prefetch = 0 : i64, scratch_operands = 0 : i64, tpu.core_type = #tpu.core_type<tc>, window_params = [{transform_indices = @transform_0, window_bounds = array<i64: 8, 256>}, {transform_indices = @transform_1, window_bounds = array<i64: 8, 256>}]} {
    %c0 = arith.constant 0 : index
    %c0_0 = arith.constant 0 : index
    %0 = vector.load %arg1[%c0, %c0_0] : memref<8x256xf32, #tpu.memory_space<vmem>>, vector<8x256xf32>
    %c0_1 = arith.constant 0 : index
    %c0_2 = arith.constant 0 : index
    %1 = vector.load %arg2[%c0_1, %c0_2] : memref<8x256xf32, #tpu.memory_space<vmem>>, vector<8x256xf32>
    tpu.vector_store %arg2[%c0_1, %c0_2], %0 {strides = array<i32>} : memref<8x256xf32, #tpu.memory_space<vmem>>, vector<8x256xf32>,
    return
  }
  func.func @transform_0(%arg0: i32) -> (i32, i32) {
    %c0_i32 = arith.constant 0 : i32
    %c0_i32_0 = arith.constant 0 : i32
    return %arg0, %c0_i32 : i32, i32
  }
  func.func @transform_1(%arg0: i32) -> (i32, i32) {
    %c0_i32 = arith.constant 0 : i32
    %c0_i32_0 = arith.constant 0 : i32
    return %arg0, %c0_i32 : i32, i32
  }
}

</mosaic_0001>

<llo_original>
// kernel: tpu_custom_call.1
$region0: #{tpu_custom_call.1}
  #allocation0 [shape = 'u32[]', space=smem, size = 0x4, offset = 0x4, fixed_abs, tag = 'smem constant byte address 0x4 - core index']
  #allocation1 [shape = 'u32[144,128]{1,0:T(1,128)}', space=vmem, size = 0x12000, scoped, tag = 'internal scratch']
  %s0 = inlined_call_operand.hbm [shape: f32[8,256], index: 0, kind: input, shape index: {}, may-alias: {0,1}]
  %s1 = inlined_call_operand.hbm [shape: f32[8,256], index: 1, kind: output, shape index: {}, may-alias: {0,1}]
  %s2 = sld [smem:[#allocation0]]
  $region18: #{tpu_custom_call.1} parent=0
    _
  %s4 = ssub.s32 1, %s2
  %s5 = scalar_select 0, %s4, %s2
  $region1: #{tpu_custom_call.1} parent=0
    #allocation2 [shape = 'u8[8192]{0}', space=vmem, size = 0x2000, scoped, tag = 'input window, operand 0, single buffered']
    #allocation3 [shape = 's32[1]{0}', space=sflag, size = 0x4, scoped, tag = 'scoped memory for tpu_custom_call.1']
    #allocation4 [shape = 's32[1]{0}', space=sflag, size = 0x4, scoped, tag = 'scoped memory for tpu_custom_call.1']
    #allocation5 [shape = 'u8[8192]{0}', space=vmem, size = 0x2000, scoped, tag = 'output window, operand 0, single buffered']
    %6 = vsyncpa [#allocation3], 0
    %7 = vsyncpa [#allocation4], 0
    // Predicated region
    $region2: #{tpu_custom_call.1} parent=1 // pred_check
      _
    $region3: #{tpu_custom_call.1} parent=1 // pred_check_branch
      %9 = sbr.rel (0) target = $region5
    $region4: #{tpu_custom_call.1} parent=1 // pred_region
      %s11 = ssub.s32 256, 256
      %12 = vsyncadd [#allocation3], %s11
      %s14 = sshll.u32 [#allocation2], 4
      %s15 = int_to_ptr.vmem [resolvable:$true] %s14
      %17 = dma.hbm_to_vmem [thread:$0]  %s0, 256, %s15, [#allocation3]
    $region5: #{tpu_custom_call.1} parent=1 // pred_fallthru
      _
    // Predicated region
    $region6: #{tpu_custom_call.1} parent=1 // pred_check
      _
    $region7: #{tpu_custom_call.1} parent=1 // pred_check_branch
      %19 = sbr.rel (0) target = $region9
    $region8: #{tpu_custom_call.1} parent=1 // pred_region
      %20 = dma.done [#allocation3], 256
    $region9: #{tpu_custom_call.1} parent=1 // pred_fallthru
      _
    %v21 = vld [vmem:[#allocation2] sm:$0xff]
    %v22 = vld [vmem:[#allocation2 + $0x8] sm:$0xff]
    %23 = vst [vmem:[#allocation5] sm:$0xff] %v21
    %24 = vst [vmem:[#allocation5 + $0x8] sm:$0xff] %v22
    // Predicated region
    $region10: #{tpu_custom_call.1} parent=1 // pred_check
      _
    $region11: #{tpu_custom_call.1} parent=1 // pred_check_branch
      %26 = sbr.rel (0) target = $region13
    $region12: #{tpu_custom_call.1} parent=1 // pred_region
      %s28 = ssub.s32 256, 256
      %29 = vsyncadd [#allocation4], %s28
      %s31 = sshll.u32 [#allocation5], 4
      %s32 = int_to_ptr.vmem [resolvable:$true] %s31
      %34 = dma.vmem_to_hbm [thread:$0]  %s32, 256, %s1, [#allocation4]
    $region13: #{tpu_custom_call.1} parent=1 // pred_fallthru
      _
    // Predicated region
    $region14: #{tpu_custom_call.1} parent=1 // pred_check
      _
    $region15: #{tpu_custom_call.1} parent=1 // pred_check_branch
      %36 = sbr.rel (0) target = $region17
    $region16: #{tpu_custom_call.1} parent=1 // pred_region
      %37 = dma.done [#allocation4], 256
    $region17: #{tpu_custom_call.1} parent=1 // pred_fallthru
      _
    %38 = vsyncpa [#allocation3], 1
    %39 = vsyncpa [#allocation4], 1

</llo_original>
